<compile_context>
chip_gen: v5e
topology: v5e:2x2
jax: 0.10.0
libtpu: 0.0.40
codegen_flags: <defaults>
</compile_context>

<pallas_src>
import numpy as np
import jax
import jax.numpy as jnp
from jax.experimental import pallas as pl
from jax.experimental.pallas import tpu as pltpu


_VPU_C_THRESHOLD = 16       # Glow / WaveGlow channel counts are tiny (4..16).
_MAX_TIME_TILE = 262144     # lane-tile ceiling (review: extend past 32768).


def _round_up(x, m):
    return ((x + m - 1) // m) * m


def _inv1x1_kernel_vpu(w_ref, z_ref, o_ref):
    """Unrolled scalar-FMA mix: out[b, o, t] = sum_c W[o, c] * z[b, c, t].

    w_ref: SMEM (C*C,) row-major weight (scalar prefetch).
    z_ref/o_ref: VMEM (nb, C, tT) blocks, time on the lane axis.
    """
    z = z_ref[...].astype(jnp.float32)          # (nb, C, tT)
    C = z.shape[1]
    for o in range(C):                          # static unroll; C is tiny
        acc = w_ref[o * C] * z[:, 0:1, :]       # scalar * (nb, 1, tT)
        for c in range(1, C):
            acc = acc + w_ref[o * C + c] * z[:, c:c + 1, :]
        o_ref[:, o:o + 1, :] = acc.astype(o_ref.dtype)


def _inv1x1_kernel_mxu(w_ref, z_ref, o_ref):
    """MXU path for larger C: out = W @ z (no transpose needed in NCT layout)."""
    z = z_ref[0]
    o_ref[0] = jnp.dot(
        w_ref[...].astype(z.dtype), z, preferred_element_type=jnp.float32
    ).astype(o_ref.dtype)


def _vmem_policy():
    """Per-generation scoped-VMEM limit and double-buffered tile budget."""
    try:
        phys = int(pltpu.get_tpu_info().vmem_capacity_bytes)
    except Exception:
        phys = 64 * 1024 * 1024                 # conservative (v7x-sized)
    # 64 MiB on 128-MiB parts (v5e/v6e), 32 MiB on v7x's 64 MiB VMEM.
    vmem_limit = min(phys // 2, 64 * 1024 * 1024)
    tile_budget = (vmem_limit * 3) // 4         # headroom for compiler scratch
    return vmem_limit, tile_budget


def _largest_lane_divisor_tile(t_pad, cap_elems):
    """Largest multiple of 128 that divides t_pad and is <= cap_elems."""
    n128 = t_pad // 128
    cap_units = max(1, cap_elems // 128)
    best = 1
    i = 1
    while i * i <= n128:
        if n128 % i == 0:
            for d in (i, n128 // i):
                if best < d <= cap_units:
                    best = d
        i += 1
    return best * 128


def _choose_time_tiling(T, cap_elems):
    """Return (T_pad, tT): padded time extent and a lane-dense tile size."""
    cap = min(cap_elems, _MAX_TIME_TILE)
    cap = max(128, (cap // 128) * 128)
    t128 = _round_up(T, 128)
    if t128 <= cap:
        return t128, t128                       # single time tile
    tT = _largest_lane_divisor_tile(t128, cap)
    if tT < cap // 8:
        # Divisibility forced a tiny tile (e.g. prime T/128): pad further to a
        # multiple of `cap` if the extra columns stay under ~12.5% overhead.
        t_alt = _round_up(T, cap)
        if t_alt - t128 <= max(t128 // 8, 1):
            return t_alt, cap
    return t128, tT


def invertible_1x1_conv_forward(z, weight, logdet=None):
    """Forward of Glow's Invertible1x1Conv (non-LU path).

    z: (N, C, T), weight: (C, C).
    Returns (x, logdet) with x[n, :, t] = W @ z[n, :, t] and
    logdet = logdet + log|det(W)| (or None if logdet is None).
    """
    N, C, T = z.shape
    assert weight.shape == (C, C)
    itemsize = z.dtype.itemsize

    vmem_limit, tile_budget = _vmem_policy()

    use_vpu = C <= _VPU_C_THRESHOLD
    # Sublane padding: f32 -> 8, bf16 -> 16, int8 -> 32.
    c_pad = _round_up(C, max(8, 32 // max(1, itemsize)))
    if not use_vpu:
        # MXU path keeps a double-buffered (C, C) weight tile in VMEM.
        tile_budget -= 2 * c_pad * _round_up(C, 128) * weight.dtype.itemsize
        tile_budget = max(tile_budget, 4 * c_pad * 128 * itemsize)

    # 2 arrays (in+out) * 2 buffers * nb * c_pad * tT * itemsize <= budget.
    cap_elems = max(128, tile_budget // (4 * c_pad * itemsize))
    T_pad, tT = _choose_time_tiling(T, cap_elems)

    # Batch blocking: fewer grid steps when T alone cannot give large tiles.
    nb = 1
    if use_vpu:
        for d in range(1, N + 1):
            if N % d == 0 and d * tT <= cap_elems:
                nb = d

    z_in = z if T_pad == T else jnp.pad(z, ((0, 0), (0, 0), (0, T_pad - T)))

    cost = pl.CostEstimate(
        flops=2 * N * C * C * T_pad,
        transcendentals=0,
        bytes_accessed=(2 * N * C * T_pad + C * C) * itemsize,
    )
    cparams = pltpu.CompilerParams(
        # Both axes independent -> megacore sharding; leading axis is the
        # (usually large) time-tile axis so the split stays balanced on v7x.
        dimension_semantics=("parallel", "parallel"),
        vmem_limit_bytes=vmem_limit,
    )
    out_shape = jax.ShapeDtypeStruct((N, C, T_pad), z.dtype)

    if use_vpu:
        w_flat = weight.astype(jnp.float32).reshape(-1)
        x = pl.pallas_call(
            _inv1x1_kernel_vpu,
            out_shape=out_shape,
            grid_spec=pltpu.PrefetchScalarGridSpec(
                num_scalar_prefetch=1,                       # weight -> SMEM
                grid=(T_pad // tT, N // nb),
                in_specs=[
                    pl.BlockSpec((nb, C, tT), lambda t, n, w: (n, 0, t)),
                ],
                out_specs=pl.BlockSpec((nb, C, tT), lambda t, n, w: (n, 0, t)),
            ),
            compiler_params=cparams,
            cost_estimate=cost,
        )(w_flat, z_in)
    else:
        x = pl.pallas_call(
            _inv1x1_kernel_mxu,
            out_shape=out_shape,
            grid_spec=pltpu.PrefetchScalarGridSpec(
                num_scalar_prefetch=0,
                grid=(T_pad // tT, N),
                in_specs=[
                    pl.BlockSpec((C, C), lambda t, n: (0, 0)),
                    pl.BlockSpec((1, C, tT), lambda t, n: (n, 0, t)),
                ],
                out_specs=pl.BlockSpec((1, C, tT), lambda t, n: (n, 0, t)),
            ),
            compiler_params=cparams,
            cost_estimate=cost,
        )(weight, z_in)

    if T_pad != T:
        x = x[:, :, :T]

    # Parameter-only glue: log|det(W)| scalar (spec's logdet_factor == 1).
    _, dlogdet = jnp.linalg.slogdet(weight)
    if logdet is not None:
        logdet = logdet + dlogdet
    # TODO(synk): lu_decomposition=True path is parameter-only glue
    # (W = P @ L @ (U + s), dlogdet = sum log|diag(s)|) and would reuse the
    # exact same kernel after reconstructing W in plain JAX.
    return x, logdet


def _reference_forward(z, weight, logdet=None):
    # Pure-JAX reference of F.conv1d(z, W.view(C, C, 1)).
    x = jnp.einsum("oc,nct->not", weight, z)
    _, dlogdet = jnp.linalg.slogdet(weight)
    if logdet is not None:
        logdet = logdet + dlogdet
    return x, logdet


if __name__ == "__main__":
    # Deterministic orthogonal weight init (same recipe as the module).
    num_channels = 4
    rng = np.random.RandomState(0)
    w_init = np.linalg.qr(rng.randn(num_channels, num_channels))[0].astype(
        "float32"
    )
    weight = jnp.asarray(w_init)

    # Small NCT input, matching conv1d layout (batch, channels, time).
    key = jax.random.PRNGKey(0)
    N, C, T = 2, num_channels, 16
    z = jax.random.normal(key, (N, C, T), dtype=jnp.float32)
    logdet = jnp.zeros((), dtype=jnp.float32)

    x, new_logdet = invertible_1x1_conv_forward(z, weight, logdet)
    x = jax.block_until_ready(x)
    new_logdet = jax.block_until_ready(new_logdet)

    x_ref, logdet_ref = _reference_forward(z, weight, logdet)
    assert jnp.allclose(x, x_ref, atol=1e-5, rtol=1e-5)
    assert jnp.allclose(new_logdet, logdet_ref, atol=1e-5, rtol=1e-5)

    # Lane-aligned T (no padding) path.
    z2 = jax.random.normal(jax.random.PRNGKey(1), (2, num_channels, 256),
                           dtype=jnp.float32)
    x2, _ = invertible_1x1_conv_forward(z2, weight, None)
    x2 = jax.block_until_ready(x2)
    x2_ref, _ = _reference_forward(z2, weight, None)
    assert jnp.allclose(x2, x2_ref, atol=1e-5, rtol=1e-5)

    # Ragged T (>128) with odd batch: exercises wrapper padding + nb blocking.
    z3 = jax.random.normal(jax.random.PRNGKey(2), (3, num_channels, 200),
                           dtype=jnp.float32)
    x3, _ = invertible_1x1_conv_forward(z3, weight, None)
    x3 = jax.block_until_ready(x3)
    x3_ref, _ = _reference_forward(z3, weight, None)
    assert jnp.allclose(x3, x3_ref, atol=1e-5, rtol=1e-5)

    print("KERNEL_OK")
</pallas_src>

<mosaic_0001>
module attributes {stable_mosaic.version = 11 : i64} {
  func.func @_inv1x1_kernel_vpu(%arg0: i32, %arg1: i32, %arg2: memref<16xf32, #tpu.memory_space<smem>>, %arg3: memref<2x4x128xf32, #tpu.memory_space<vmem>>, %arg4: memref<2x4x128xf32, #tpu.memory_space<vmem>>) attributes {dimension_semantics = [#tpu.dimension_semantics<parallel>, #tpu.dimension_semantics<parallel>], iteration_bounds = array<i64: 1, 1>, scalar_prefetch = 1 : i64, scratch_operands = 0 : i64, tpu.core_type = #tpu.core_type<tc>, window_params = [{transform_indices = @transform_0, window_bounds = array<i64: 2, 4, 128>}, {transform_indices = @transform_1, window_bounds = array<i64: 2, 4, 128>}]} {
    %c0 = arith.constant 0 : index
    %c0_0 = arith.constant 0 : index
    %c0_1 = arith.constant 0 : index
    %0 = vector.load %arg3[%c0, %c0_0, %c0_1] : memref<2x4x128xf32, #tpu.memory_space<vmem>>, vector<2x4x128xf32>
    %c0_2 = arith.constant 0 : index
    %1 = memref.load %arg2[%c0_2] : memref<16xf32, #tpu.memory_space<smem>>
    %2 = vector.extract_strided_slice %0 {offsets = [0, 0, 0], sizes = [2, 1, 128], strides = [1, 1, 1]} : vector<2x4x128xf32> to vector<2x1x128xf32>
    %3 = vector.broadcast %1 : f32 to vector<2x1x128xf32>
    %4 = arith.mulf %3, %2 : vector<2x1x128xf32>
    %c1 = arith.constant 1 : index
    %5 = memref.load %arg2[%c1] : memref<16xf32, #tpu.memory_space<smem>>
    %6 = vector.extract_strided_slice %0 {offsets = [0, 1, 0], sizes = [2, 1, 128], strides = [1, 1, 1]} : vector<2x4x128xf32> to vector<2x1x128xf32>
    %7 = vector.broadcast %5 : f32 to vector<2x1x128xf32>
    %8 = arith.mulf %7, %6 : vector<2x1x128xf32>
    %9 = arith.addf %4, %8 : vector<2x1x128xf32>
    %c2 = arith.constant 2 : index
    %10 = memref.load %arg2[%c2] : memref<16xf32, #tpu.memory_space<smem>>
    %11 = vector.extract_strided_slice %0 {offsets = [0, 2, 0], sizes = [2, 1, 128], strides = [1, 1, 1]} : vector<2x4x128xf32> to vector<2x1x128xf32>
    %12 = vector.broadcast %10 : f32 to vector<2x1x128xf32>
    %13 = arith.mulf %12, %11 : vector<2x1x128xf32>
    %14 = arith.addf %9, %13 : vector<2x1x128xf32>
    %c3 = arith.constant 3 : index
    %15 = memref.load %arg2[%c3] : memref<16xf32, #tpu.memory_space<smem>>
    %16 = vector.extract_strided_slice %0 {offsets = [0, 3, 0], sizes = [2, 1, 128], strides = [1, 1, 1]} : vector<2x4x128xf32> to vector<2x1x128xf32>
    %17 = vector.broadcast %15 : f32 to vector<2x1x128xf32>
    %18 = arith.mulf %17, %16 : vector<2x1x128xf32>
    %19 = arith.addf %14, %18 : vector<2x1x128xf32>
    %c0_3 = arith.constant 0 : index
    %c0_4 = arith.constant 0 : index
    %c0_5 = arith.constant 0 : index
    %20 = vector.load %arg4[%c0_3, %c0_4, %c0_5] : memref<2x4x128xf32, #tpu.memory_space<vmem>>, vector<2x1x128xf32>
    tpu.vector_store %arg4[%c0_3, %c0_4, %c0_5], %19 {strides = array<i32>} : memref<2x4x128xf32, #tpu.memory_space<vmem>>, vector<2x1x128xf32>,
    %c4 = arith.constant 4 : index
    %21 = memref.load %arg2[%c4] : memref<16xf32, #tpu.memory_space<smem>>
    %22 = vector.extract_strided_slice %0 {offsets = [0, 0, 0], sizes = [2, 1, 128], strides = [1, 1, 1]} : vector<2x4x128xf32> to vector<2x1x128xf32>
    %23 = vector.broadcast %21 : f32 to vector<2x1x128xf32>
    %24 = arith.mulf %23, %22 : vector<2x1x128xf32>
    %c5 = arith.constant 5 : index
    %25 = memref.load %arg2[%c5] : memref<16xf32, #tpu.memory_space<smem>>
    %26 = vector.extract_strided_slice %0 {offsets = [0, 1, 0], sizes = [2, 1, 128], strides = [1, 1, 1]} : vector<2x4x128xf32> to vector<2x1x128xf32>
    %27 = vector.broadcast %25 : f32 to vector<2x1x128xf32>
    %28 = arith.mulf %27, %26 : vector<2x1x128xf32>
    %29 = arith.addf %24, %28 : vector<2x1x128xf32>
    %c6 = arith.constant 6 : index
    %30 = memref.load %arg2[%c6] : memref<16xf32, #tpu.memory_space<smem>>
    %31 = vector.extract_strided_slice %0 {offsets = [0, 2, 0], sizes = [2, 1, 128], strides = [1, 1, 1]} : vector<2x4x128xf32> to vector<2x1x128xf32>
    %32 = vector.broadcast %30 : f32 to vector<2x1x128xf32>
    %33 = arith.mulf %32, %31 : vector<2x1x128xf32>
    %34 = arith.addf %29, %33 : vector<2x1x128xf32>
    %c7 = arith.constant 7 : index
    %35 = memref.load %arg2[%c7] : memref<16xf32, #tpu.memory_space<smem>>
    %36 = vector.extract_strided_slice %0 {offsets = [0, 3, 0], sizes = [2, 1, 128], strides = [1, 1, 1]} : vector<2x4x128xf32> to vector<2x1x128xf32>
    %37 = vector.broadcast %35 : f32 to vector<2x1x128xf32>
    %38 = arith.mulf %37, %36 : vector<2x1x128xf32>
    %39 = arith.addf %34, %38 : vector<2x1x128xf32>
    %c0_6 = arith.constant 0 : index
    %c1_7 = arith.constant 1 : index
    %c0_8 = arith.constant 0 : index
    %40 = vector.load %arg4[%c0_6, %c1_7, %c0_8] : memref<2x4x128xf32, #tpu.memory_space<vmem>>, vector<2x1x128xf32>
    tpu.vector_store %arg4[%c0_6, %c1_7, %c0_8], %39 {strides = array<i32>} : memref<2x4x128xf32, #tpu.memory_space<vmem>>, vector<2x1x128xf32>,
    %c8 = arith.constant 8 : index
    %41 = memref.load %arg2[%c8] : memref<16xf32, #tpu.memory_space<smem>>
    %42 = vector.extract_strided_slice %0 {offsets = [0, 0, 0], sizes = [2, 1, 128], strides = [1, 1, 1]} : vector<2x4x128xf32> to vector<2x1x128xf32>
    %43 = vector.broadcast %41 : f32 to vector<2x1x128xf32>
    %44 = arith.mulf %43, %42 : vector<2x1x128xf32>
    %c9 = arith.constant 9 : index
    %45 = memref.load %arg2[%c9] : memref<16xf32, #tpu.memory_space<smem>>
    %46 = vector.extract_strided_slice %0 {offsets = [0, 1, 0], sizes = [2, 1, 128], strides = [1, 1, 1]} : vector<2x4x128xf32> to vector<2x1x128xf32>
    %47 = vector.broadcast %45 : f32 to vector<2x1x128xf32>
    %48 = arith.mulf %47, %46 : vector<2x1x128xf32>
    %49 = arith.addf %44, %48 : vector<2x1x128xf32>
    %c10 = arith.constant 10 : index
    %50 = memref.load %arg2[%c10] : memref<16xf32, #tpu.memory_space<smem>>
    %51 = vector.extract_strided_slice %0 {offsets = [0, 2, 0], sizes = [2, 1, 128], strides = [1, 1, 1]} : vector<2x4x128xf32> to vector<2x1x128xf32>
    %52 = vector.broadcast %50 : f32 to vector<2x1x128xf32>
    %53 = arith.mulf %52, %51 : vector<2x1x128xf32>
    %54 = arith.addf %49, %53 : vector<2x1x128xf32>
    %c11 = arith.constant 11 : index
    %55 = memref.load %arg2[%c11] : memref<16xf32, #tpu.memory_space<smem>>
    %56 = vector.extract_strided_slice %0 {offsets = [0, 3, 0], sizes = [2, 1, 128], strides = [1, 1, 1]} : vector<2x4x128xf32> to vector<2x1x128xf32>
    %57 = vector.broadcast %55 : f32 to vector<2x1x128xf32>
    %58 = arith.mulf %57, %56 : vector<2x1x128xf32>
    %59 = arith.addf %54, %58 : vector<2x1x128xf32>
    %c0_9 = arith.constant 0 : index
    %c2_10 = arith.constant 2 : index
    %c0_11 = arith.constant 0 : index
    %60 = vector.load %arg4[%c0_9, %c2_10, %c0_11] : memref<2x4x128xf32, #tpu.memory_space<vmem>>, vector<2x1x128xf32>
    tpu.vector_store %arg4[%c0_9, %c2_10, %c0_11], %59 {strides = array<i32>} : memref<2x4x128xf32, #tpu.memory_space<vmem>>, vector<2x1x128xf32>,
    %c12 = arith.constant 12 : index
    %61 = memref.load %arg2[%c12] : memref<16xf32, #tpu.memory_space<smem>>
    %62 = vector.extract_strided_slice %0 {offsets = [0, 0, 0], sizes = [2, 1, 128], strides = [1, 1, 1]} : vector<2x4x128xf32> to vector<2x1x128xf32>
    %63 = vector.broadcast %61 : f32 to vector<2x1x128xf32>
    %64 = arith.mulf %63, %62 : vector<2x1x128xf32>
    %c13 = arith.constant 13 : index
    %65 = memref.load %arg2[%c13] : memref<16xf32, #tpu.memory_space<smem>>
    %66 = vector.extract_strided_slice %0 {offsets = [0, 1, 0], sizes = [2, 1, 128], strides = [1, 1, 1]} : vector<2x4x128xf32> to vector<2x1x128xf32>
    %67 = vector.broadcast %65 : f32 to vector<2x1x128xf32>
    %68 = arith.mulf %67, %66 : vector<2x1x128xf32>
    %69 = arith.addf %64, %68 : vector<2x1x128xf32>
    %c14 = arith.constant 14 : index
    %70 = memref.load %arg2[%c14] : memref<16xf32, #tpu.memory_space<smem>>
    %71 = vector.extract_strided_slice %0 {offsets = [0, 2, 0], sizes = [2, 1, 128], strides = [1, 1, 1]} : vector<2x4x128xf32> to vector<2x1x128xf32>
    %72 = vector.broadcast %70 : f32 to vector<2x1x128xf32>
    %73 = arith.mulf %72, %71 : vector<2x1x128xf32>
    %74 = arith.addf %69, %73 : vector<2x1x128xf32>
    %c15 = arith.constant 15 : index
    %75 = memref.load %arg2[%c15] : memref<16xf32, #tpu.memory_space<smem>>
    %76 = vector.extract_strided_slice %0 {offsets = [0, 3, 0], sizes = [2, 1, 128], strides = [1, 1, 1]} : vector<2x4x128xf32> to vector<2x1x128xf32>
    %77 = vector.broadcast %75 : f32 to vector<2x1x128xf32>
    %78 = arith.mulf %77, %76 : vector<2x1x128xf32>
    %79 = arith.addf %74, %78 : vector<2x1x128xf32>
    %c0_12 = arith.constant 0 : index
    %c3_13 = arith.constant 3 : index
    %c0_14 = arith.constant 0 : index
    %80 = vector.load %arg4[%c0_12, %c3_13, %c0_14] : memref<2x4x128xf32, #tpu.memory_space<vmem>>, vector<2x1x128xf32>
    tpu.vector_store %arg4[%c0_12, %c3_13, %c0_14], %79 {strides = array<i32>} : memref<2x4x128xf32, #tpu.memory_space<vmem>>, vector<2x1x128xf32>,
    return
  }
  func.func @transform_0(%arg0: i32, %arg1: i32, %arg2: memref<16xf32, #tpu.memory_space<smem>>) -> (i32, i32, i32) {
    %c0_i32 = arith.constant 0 : i32
    %c0_i32_0 = arith.constant 0 : i32
    return %arg1, %c0_i32, %arg0 : i32, i32, i32
  }
  func.func @transform_1(%arg0: i32, %arg1: i32, %arg2: memref<16xf32, #tpu.memory_space<smem>>) -> (i32, i32, i32) {
    %c0_i32 = arith.constant 0 : i32
    %c0_i32_0 = arith.constant 0 : i32
    return %arg1, %c0_i32, %arg0 : i32, i32, i32
  }
}

</mosaic_0001>

<llo_original>
// kernel: tpu_custom_call.1
$region0: #{tpu_custom_call.1}
  #allocation0 [shape = 'u32[]', space=smem, size = 0x4, offset = 0x4, fixed_abs, tag = 'smem constant byte address 0x4 - core index']
  #allocation1 [shape = 'u32[72,128]{1,0:T(1,128)}', space=vmem, size = 0x9000, scoped, tag = 'internal scratch']
  #allocation2 [shape = 's32[1]{0}', space=sflag, size = 0x4, scoped, tag = 'scoped memory for tpu_custom_call.1']
  #allocation3 [shape = 'u8[512]{0}', space=smem, size = 0x200, scoped, tag = 'prefetched SMEM operand 0']
  %s0 = inlined_call_operand.hbm [shape: f32[16], index: 0, kind: input, shape index: {}]
  %s1 = inlined_call_operand.hbm [shape: f32[2,4,128], index: 1, kind: input, shape index: {}]
  %s2 = inlined_call_operand.hbm [shape: f32[2,4,128], index: 2, kind: output, shape index: {}]
  %s3 = sld [smem:[#allocation0]]
  $region18: #{tpu_custom_call.1} parent=0
    _
  %s5 = ssub.s32 1, %s3
  %s6 = scalar_select 0, %s5, %s3
  %s8 = sshll.u32 %s0, 4
  %s9 = int_to_ptr.hbm [resolvable:$true] %s8
  %11 = dma.hbm_to_smem %s9, 16, [#allocation3], [#allocation2]
  %13 = dma.done [#allocation2], 16
  %14 = sfence
  $region1: #{tpu_custom_call.1} parent=0
    #allocation4 [shape = 'u8[4096]{0}', space=vmem, size = 0x1000, scoped, tag = 'input window, operand 1, single buffered']
    #allocation5 [shape = 's32[1]{0}', space=sflag, size = 0x4, scoped, tag = 'scoped memory for tpu_custom_call.1']
    #allocation6 [shape = 's32[1]{0}', space=sflag, size = 0x4, scoped, tag = 'scoped memory for tpu_custom_call.1']
    #allocation7 [shape = 'u8[4096]{0}', space=vmem, size = 0x1000, scoped, tag = 'output window, operand 0, single buffered']
    %15 = vsyncpa [#allocation5], 0
    %16 = vsyncpa [#allocation6], 0
    // Predicated region
    $region2: #{tpu_custom_call.1} parent=1 // pred_check
      _
    $region3: #{tpu_custom_call.1} parent=1 // pred_check_branch
      %18 = sbr.rel (0) target = $region5
    $region4: #{tpu_custom_call.1} parent=1 // pred_region
      %20 = vsyncadd [#allocation5], 0
      %s21 = sshll.u32 %s1, 4
      %s22 = int_to_ptr.hbm [resolvable:$true] %s21
      %s23 = sshll.u32 [#allocation4], 4
      %s24 = int_to_ptr.vmem [resolvable:$true] %s23
      %29 = dma.hbm_to_vmem [thread:$0]  %s22, 128, %s24, [#allocation5], 64, 64, 4
    $region5: #{tpu_custom_call.1} parent=1 // pred_fallthru
      _
    // Predicated region
    $region6: #{tpu_custom_call.1} parent=1 // pred_check
      _
    $region7: #{tpu_custom_call.1} parent=1 // pred_check_branch
      %31 = sbr.rel (0) target = $region9
    $region8: #{tpu_custom_call.1} parent=1 // pred_region
      %33 = dma.done [#allocation5], 128
    $region9: #{tpu_custom_call.1} parent=1 // pred_fallthru
      _
    %v34 = vld [vmem:[#allocation4] sm:$0xf]
    %v35 = vld [vmem:[#allocation4 + $0x4] sm:$0xf]
    %s36 = sld [smem:[#allocation3]]
    %v37 = vstv %s36
    %v38 = vmul.f32 %v37, %v34
    %v39 = vmul.f32 %v37, %v35
    %s40 = sld [smem:[#allocation3 + $0x1]]
    %v41 = vstv %s40
    %v42 = vmul.f32 %v41, %v34
    %v43 = vmul.f32 %v41, %v35
    %v46 = vrot.slane %v42, 1
    %v47 = vrot.slane %v43, 1
    %v50 = vadd.f32 %v38, %v46
    %v51 = vadd.f32 %v39, %v47
    %s52 = sld [smem:[#allocation3 + $0x2]]
    %v53 = vstv %s52
    %v54 = vmul.f32 %v53, %v34
    %v55 = vmul.f32 %v53, %v35
    %v58 = vrot.slane %v54, 2
    %v59 = vrot.slane %v55, 2
    %v62 = vadd.f32 %v50, %v58
    %v63 = vadd.f32 %v51, %v59
    %s64 = sld [smem:[#allocation3 + $0x3]]
    %v65 = vstv %s64
    %v66 = vmul.f32 %v65, %v34
    %v67 = vmul.f32 %v65, %v35
    %v70 = vrot.slane %v66, 3
    %v71 = vrot.slane %v67, 3
    %v74 = vadd.f32 %v62, %v70
    %v75 = vadd.f32 %v63, %v71
    %76 = vst [vmem:[#allocation7] sm:$0x1] %v74
    %77 = vst [vmem:[#allocation7 + $0x4] sm:$0x1] %v75
    %s78 = sld [smem:[#allocation3 + $0x4]]
    %v79 = vstv %s78
    %v80 = vmul.f32 %v79, %v34
    %v81 = vmul.f32 %v79, %v35
    %s82 = sld [smem:[#allocation3 + $0x5]]
    %v83 = vstv %s82
    %v84 = vmul.f32 %v83, %v34
    %v85 = vmul.f32 %v83, %v35
    %v88 = vrot.slane %v84, 1
    %v89 = vrot.slane %v85, 1
    %v92 = vadd.f32 %v80, %v88
    %v93 = vadd.f32 %v81, %v89
    %s94 = sld [smem:[#allocation3 + $0x6]]
    %v95 = vstv %s94
    %v96 = vmul.f32 %v95, %v34
    %v97 = vmul.f32 %v95, %v35
    %v100 = vrot.slane %v96, 2
    %v101 = vrot.slane %v97, 2
    %v104 = vadd.f32 %v92, %v100
    %v105 = vadd.f32 %v93, %v101
    %s106 = sld [smem:[#allocation3 + $0x7]]
    %v107 = vstv %s106
    %v108 = vmul.f32 %v107, %v34
    %v109 = vmul.f32 %v107, %v35
    %v112 = vrot.slane %v108, 3
    %v113 = vrot.slane %v109, 3
    %v116 = vadd.f32 %v104, %v112
    %v117 = vadd.f32 %v105, %v113
    %118 = vst [vmem:[#allocation7 + $0x1] sm:$0x1] %v116
    %119 = vst [vmem:[#allocation7 + $0x5] sm:$0x1] %v117
    %s120 = sld [smem:[#allocation3 + $0x8]]
    %v121 = vstv %s120
    %v122 = vmul.f32 %v121, %v34
    %v123 = vmul.f32 %v121, %v35
    %s124 = sld [smem:[#allocation3 + $0x9]]
    %v125 = vstv %s124
    %v126 = vmul.f32 %v125, %v34
    %v127 = vmul.f32 %v125, %v35
    %v130 = vrot.slane %v126, 1
    %v131 = vrot.slane %v127, 1
    %v134 = vadd.f32 %v122, %v130
    %v135 = vadd.f32 %v123, %v131
    %s136 = sld [smem:[#allocation3 + $0xa]]
    %v137 = vstv %s136
    %v138 = vmul.f32 %v137, %v34
    %v139 = vmul.f32 %v137, %v35
    %v142 = vrot.slane %v138, 2
    %v143 = vrot.slane %v139, 2
    %v146 = vadd.f32 %v134, %v142
    %v147 = vadd.f32 %v135, %v143
    %s148 = sld [smem:[#allocation3 + $0xb]]
    %v149 = vstv %s148
    %v150 = vmul.f32 %v149, %v34
    %v151 = vmul.f32 %v149, %v35
    %v154 = vrot.slane %v150, 3
    %v155 = vrot.slane %v151, 3
    %v158 = vadd.f32 %v146, %v154
    %v159 = vadd.f32 %v147, %v155
    %160 = vst [vmem:[#allocation7 + $0x2] sm:$0x1] %v158
    %161 = vst [vmem:[#allocation7 + $0x6] sm:$0x1] %v159
    %s162 = sld [smem:[#allocation3 + $0xc]]
    %v163 = vstv %s162
    %v164 = vmul.f32 %v163, %v34
    %v165 = vmul.f32 %v163, %v35
    %s166 = sld [smem:[#allocation3 + $0xd]]
    %v167 = vstv %s166
    %v168 = vmul.f32 %v167, %v34
    %v169 = vmul.f32 %v167, %v35
    %v172 = vrot.slane %v168, 1
    %v173 = vrot.slane %v169, 1
    %v176 = vadd.f32 %v164, %v172
    %v177 = vadd.f32 %v165, %v173
    %s178 = sld [smem:[#allocation3 + $0xe]]
    %v179 = vstv %s178
    %v180 = vmul.f32 %v179, %v34
    %v181 = vmul.f32 %v179, %v35
    %v184 = vrot.slane %v180, 2
    %v185 = vrot.slane %v181, 2
    %v188 = vadd.f32 %v176, %v184
    %v189 = vadd.f32 %v177, %v185
    %s190 = sld [smem:[#allocation3 + $0xf]]
    %v191 = vstv %s190
    %v192 = vmul.f32 %v191, %v34
    %v193 = vmul.f32 %v191, %v35
    %v196 = vrot.slane %v192, 3
    %v197 = vrot.slane %v193, 3
    %v200 = vadd.f32 %v188, %v196
    %v201 = vadd.f32 %v189, %v197
    %202 = vst [vmem:[#allocation7 + $0x3] sm:$0x1] %v200
    %203 = vst [vmem:[#allocation7 + $0x7] sm:$0x1] %v201
    // Predicated region
    $region10: #{tpu_custom_call.1} parent=1 // pred_check
      _
    $region11: #{tpu_custom_call.1} parent=1 // pred_check_branch
      %205 = sbr.rel (0) target = $region13
    $region12: #{tpu_custom_call.1} parent=1 // pred_region
      %207 = vsyncadd [#allocation6], 0
      %s208 = sshll.u32 [#allocation7], 4
      %s209 = int_to_ptr.vmem [resolvable:$true] %s208
      %s210 = sshll.u32 %s2, 4
      %s211 = int_to_ptr.hbm [resolvable:$true] %s210
      %216 = dma.vmem_to_hbm [thread:$0]  %s209, 128, %s211, [#allocation6], 64, 64, 4
    $region13: #{tpu_custom_call.1} parent=1 // pred_fallthru
      _
    // Predicated region
    $region14: #{tpu_custom_call.1} parent=1 // pred_check
      _
    $region15: #{tpu_custom_call.1} parent=1 // pred_check_branch
      %218 = sbr.rel (0) target = $region17
    $region16: #{tpu_custom_call.1} parent=1 // pred_region
      %220 = dma.done [#allocation6], 128
    $region17: #{tpu_custom_call.1} parent=1 // pred_fallthru
      _
    %221 = vsyncpa [#allocation5], 1
    %222 = vsyncpa [#allocation6], 1

</llo_original>
